<compile_context>
chip_gen: v6e
topology: v6e:2x2x1
jax: 0.10.0
libtpu: 0.0.40
codegen_flags: <defaults>
</compile_context>

<pallas_src>
import functools

import jax
import jax.numpy as jnp
from jax import lax
from jax.experimental import pallas as pl
from jax.experimental.pallas import tpu as pltpu


# ----------------------------------------------------------------------------- helpers

def _vmem_physical_bytes():
    """Physical VMEM of the local TPU generation (guarded; falls back to v7x's 64 MiB)."""
    try:
        info = pltpu.get_tpu_info()
        for attr in ("vmem_capacity_bytes", "vmem_size_bytes", "vmem_bytes"):
            v = getattr(info, attr, None)
            if v:
                return int(v)
    except Exception:
        pass
    return 64 * 1024 * 1024


def _layernorm(x, gamma, beta, eps=1e-12):
    """Row-wise LayerNorm over the last axis, two-pass statistics (f32)."""
    inv_h = 1.0 / x.shape[-1]
    mean = jnp.sum(x, axis=-1, keepdims=True) * inv_h
    xc = x - mean
    var = jnp.sum(xc * xc, axis=-1, keepdims=True) * inv_h   # >= 0 by construction
    return xc * lax.rsqrt(var + eps) * gamma + beta


# -------------------------------------------------------------- fast path (VMEM table)

def _wemb_kernel_vmem_table(ids_ref,     # (1, TILE_S, 1) int32, VMEM
                            word_ref,    # (V, H), whole table resident in VMEM
                            pos_ref,     # (TILE_S, H), VMEM
                            gamma_ref,   # (1, H) f32, VMEM
                            beta_ref,    # (1, H) f32, VMEM
                            out_ref):    # (1, TILE_S, H) output tile
    ids_col = ids_ref[0]                                   # (TILE_S, 1) int32
    tile_s = ids_col.shape[0]
    vocab = word_ref.shape[0]

    # One-hot MXU gather: onehot (TILE_S, V) @ table (V, H).  Exact row selection
    # (padding_idx=0 handled by the zero row of the table itself).
    col = lax.broadcasted_iota(jnp.int32, (tile_s, vocab), 1)
    onehot = (ids_col == col).astype(word_ref.dtype)
    w = jnp.dot(onehot, word_ref[...],
                preferred_element_type=jnp.float32,
                precision=lax.Precision.HIGHEST)

    x = w + pos_ref[...].astype(jnp.float32)
    y = _layernorm(x, gamma_ref[...], beta_ref[...])
    # dropout(p) in eval mode == identity
    out_ref[0, :, :] = y.astype(out_ref.dtype)


# --------------------------------------------------- slow path (HBM table, DMA gather)

def _wemb_kernel_hbm_table(ids_ref,      # (B*S,) int32, SMEM (scalar prefetch)
                           word_hbm,     # (V, H), HBM (pl.ANY) -- DMA source only
                           pos_ref,      # (TILE_S, H), VMEM
                           gamma_ref,    # (1, H) f32, VMEM
                           beta_ref,     # (1, H) f32, VMEM
                           out_ref,      # (1, TILE_S, H) output tile
                           xbuf,         # (2, TILE_S, H) VMEM scratch (double buffer)
                           sems,         # (2,) DMA semaphores (one per buffer slot)
                           *, seq_len, batch, tile_s, n_s_tiles, unroll):
    s = pl.program_id(0)
    b = pl.program_id(1)
    t = s * batch + b                      # linear step; grid is sequential (arbitrary)
    total = n_s_tiles * batch
    slot = lax.rem(t, 2)

    def issue_rows(base, slot_):
        # All SMEM id reads happen here, before any semaphore wait (no sst->sld stall).
        def body(r, carry):
            tok = ids_ref[base + r]        # ids are pre-clipped in the wrapper
            pltpu.make_async_copy(word_hbm.at[pl.ds(tok, 1), :],
                                  xbuf.at[slot_, pl.ds(r, 1), :],
                                  sems.at[slot_]).start()
            return carry
        lax.fori_loop(0, tile_s, body, 0, unroll=unroll)

    def wait_rows(slot_):
        def body(r, carry):
            # src slice is shape-only for the wait; dst/sem identify the copies.
            pltpu.make_async_copy(word_hbm.at[pl.ds(0, 1), :],
                                  xbuf.at[slot_, pl.ds(r, 1), :],
                                  sems.at[slot_]).wait()
            return carry
        lax.fori_loop(0, tile_s, body, 0, unroll=unroll)

    base_cur = b * seq_len + s * tile_s

    # Warm-up: the very first step fetches its own rows.
    @pl.when(t == 0)
    def _():
        issue_rows(base_cur, slot)

    # Cross-step prefetch: issue the NEXT step's rows into the other buffer before
    # doing this step's compute, so the gather overlaps LN + output writeback.
    @pl.when(t + 1 < total)
    def _():
        nb = b + 1
        wrap = nb == batch
        nb = jnp.where(wrap, 0, nb)
        ns = jnp.where(wrap, s + 1, s)
        issue_rows(nb * seq_len + ns * tile_s, 1 - slot)

    # Wait only for the rows this step actually consumes.
    wait_rows(slot)

    x = xbuf[slot].astype(jnp.float32) + pos_ref[...].astype(jnp.float32)
    y = _layernorm(x, gamma_ref[...], beta_ref[...])
    # dropout(p) in eval mode == identity
    out_ref[0, :, :] = y.astype(out_ref.dtype)


# ------------------------------------------------------------------------------ wrapper

def word_embedding_forward(ids, word_table, pos_table, gamma, beta, *,
                           tile_s=None, unroll=8, force_hbm_gather=False,
                           out_dtype=jnp.float32):
    B, S = ids.shape
    V, H = word_table.shape
    assert pos_table.shape[0] >= S and pos_table.shape[1] == H

    phys_vmem = _vmem_physical_bytes()
    vmem_cap = (3 * phys_vmem) // 4            # generation-aware headroom (v5e/v6e/v7x)

    itemsize = word_table.dtype.itemsize
    table_bytes = V * H * itemsize

    # Fast path: whole table resident in VMEM, one-hot MXU gather (small/medium vocabs).
    use_vmem_table = ((not force_hbm_gather)
                      and table_bytes <= phys_vmem // 5
                      and V <= 8192)

    # Pick the largest row tile that divides S and fits the VMEM budget.
    if tile_s is None:
        cands = [c for c in (1024, 512, 256, 128, 64, 32, 16, 8) if S % c == 0]
        if not cands:
            tile_s = S
        else:
            tile_s = cands[-1]
            fixed = 2 * table_bytes if use_vmem_table else 0
            for c in cands:
                per_tile = 8 * c * H * 4 + (c * V * itemsize if use_vmem_table else 0)
                if fixed + per_tile <= vmem_cap:
                    tile_s = c
                    break
    assert S % tile_s == 0, "sequence length must be divisible by the row tile"
    n_s_tiles = S // tile_s

    # Hoisted id guard (one XLA op) -- out-of-range ids are clamped rather than faulting.
    ids_i32 = jnp.clip(ids.astype(jnp.int32), 0, V - 1)
    pos = pos_table[:S]                               # (S, H) positional rows actually used
    gamma2 = gamma.reshape(1, H).astype(jnp.float32)
    beta2 = beta.reshape(1, H).astype(jnp.float32)

    if use_vmem_table:
        ids3 = ids_i32.reshape(B, S, 1)
        work = (2 * table_bytes + 6 * tile_s * H * 4
                + tile_s * V * itemsize + 4 * tile_s)
        vmem_limit = int(min(max(2 * work, 4 << 20), vmem_cap))
        return pl.pallas_call(
            _wemb_kernel_vmem_table,
            out_shape=jax.ShapeDtypeStruct((B, S, H), out_dtype),
            grid=(n_s_tiles, B),                      # B innermost -> pos tile reused
            in_specs=[
                pl.BlockSpec((1, tile_s, 1), lambda s, b: (b, s, 0)),   # ids
                pl.BlockSpec((V, H), lambda s, b: (0, 0)),              # table (VMEM, fetched once)
                pl.BlockSpec((tile_s, H), lambda s, b: (s, 0)),         # positional rows
                pl.BlockSpec((1, H), lambda s, b: (0, 0)),              # gamma
                pl.BlockSpec((1, H), lambda s, b: (0, 0)),              # beta
            ],
            out_specs=pl.BlockSpec((1, tile_s, H), lambda s, b: (b, s, 0)),
            compiler_params=pltpu.CompilerParams(
                dimension_semantics=("parallel", "parallel"),
                vmem_limit_bytes=vmem_limit),
        )(ids3, word_table, pos, gamma2, beta2)

    # Large-vocab path: HBM-resident table, double-buffered async row gather.
    ids_flat = ids_i32.reshape(B * S)                 # flat 1-D -> minimal SMEM footprint
    unroll = max(1, min(unroll, tile_s))
    kernel = functools.partial(_wemb_kernel_hbm_table, seq_len=S, batch=B,
                               tile_s=tile_s, n_s_tiles=n_s_tiles, unroll=unroll)

    work = 2 * tile_s * H * itemsize + 6 * tile_s * H * 4
    vmem_limit = int(min(max(2 * work, 4 << 20), vmem_cap))

    grid_spec = pltpu.PrefetchScalarGridSpec(
        num_scalar_prefetch=1,                        # ids_flat lands in SMEM
        grid=(n_s_tiles, B),                          # B innermost -> pos tile reused
        in_specs=[
            pl.BlockSpec(memory_space=pl.ANY),                          # table stays in HBM
            pl.BlockSpec((tile_s, H), lambda s, b, ids: (s, 0)),        # positional rows
            pl.BlockSpec((1, H), lambda s, b, ids: (0, 0)),             # gamma
            pl.BlockSpec((1, H), lambda s, b, ids: (0, 0)),             # beta
        ],
        out_specs=pl.BlockSpec((1, tile_s, H), lambda s, b, ids: (b, s, 0)),
        scratch_shapes=[
            pltpu.VMEM((2, tile_s, H), word_table.dtype),               # double buffer
            pltpu.SemaphoreType.DMA((2,)),                              # one sem per slot
        ],
    )
    return pl.pallas_call(
        kernel,
        out_shape=jax.ShapeDtypeStruct((B, S, H), out_dtype),
        grid_spec=grid_spec,
        compiler_params=pltpu.CompilerParams(
            # Sequential grid so "next step" (cross-step prefetch target) is well defined.
            dimension_semantics=("arbitrary", "arbitrary"),
            vmem_limit_bytes=vmem_limit),
    )(ids_flat, word_table, pos, gamma2, beta2)


# ---------------------------------------------------------------------------- reference

def reference(ids, word_table, pos_table, gamma, beta):
    w = word_table[ids]                                  # (B, S, H)
    p = pos_table[: ids.shape[1]][None]                  # (1, S, H)
    x = w + p
    mean = x.mean(-1, keepdims=True)
    var = ((x - mean) ** 2).mean(-1, keepdims=True)
    return (x - mean) / jnp.sqrt(var + 1e-12) * gamma + beta


if __name__ == "__main__":
    # Small shapes consistent with the module.
    DICT_SIZE = 96          # num_embeddings of word table
    MAX_SEQ_LEN = 16        # num_embeddings of position table
    HIDDEN = 128            # embedding_dim (lane-aligned)
    B, S = 2, 8

    key = jax.random.PRNGKey(0)
    k_w, k_p, k_g, k_b, k_ids = jax.random.split(key, 5)

    word_table = jax.random.normal(k_w, (DICT_SIZE, HIDDEN), jnp.float32) * 0.02
    word_table = word_table.at[0].set(0.0)               # padding_idx=0 -> zero row
    pos_table = jax.random.normal(k_p, (MAX_SEQ_LEN, HIDDEN), jnp.float32) * 0.02
    gamma = 1.0 + 0.1 * jax.random.normal(k_g, (HIDDEN,), jnp.float32)
    beta = 0.1 * jax.random.normal(k_b, (HIDDEN,), jnp.float32)

    ids = jax.random.randint(k_ids, (B, S), 0, DICT_SIZE, dtype=jnp.int32)
    ids = ids.at[0, 0].set(0)                            # exercise the padding row

    ref = reference(ids, word_table, pos_table, gamma, beta)

    # Default (small-vocab fast path: VMEM-resident table + one-hot MXU gather).
    out_fast = jax.block_until_ready(
        word_embedding_forward(ids, word_table, pos_table, gamma, beta))
    assert out_fast.shape == (B, S, HIDDEN)
    err_fast = float(jnp.max(jnp.abs(out_fast - ref)))
    assert jnp.allclose(out_fast, ref, atol=1e-4, rtol=1e-4), (
        f"fast path mismatch vs reference, max abs err {err_fast:.3e}")

    # Also exercise the large-vocab path (HBM table, double-buffered DMA row gather).
    out_slow = jax.block_until_ready(
        word_embedding_forward(ids, word_table, pos_table, gamma, beta,
                               force_hbm_gather=True))
    err_slow = float(jnp.max(jnp.abs(out_slow - ref)))
    assert jnp.allclose(out_slow, ref, atol=1e-4, rtol=1e-4), (
        f"HBM-gather path mismatch vs reference, max abs err {err_slow:.3e}")

    print("KERNEL_OK")
</pallas_src>

<mosaic_0001>
module attributes {stable_mosaic.version = 11 : i64} {
  func.func @_wemb_kernel_vmem_table(%arg0: i32, %arg1: i32, %arg2: memref<1x8x1xi32, #tpu.memory_space<vmem>>, %arg3: memref<96x128xf32, #tpu.memory_space<vmem>>, %arg4: memref<8x128xf32, #tpu.memory_space<vmem>>, %arg5: memref<1x128xf32, #tpu.memory_space<vmem>>, %arg6: memref<1x128xf32, #tpu.memory_space<vmem>>, %arg7: memref<1x8x128xf32, #tpu.memory_space<vmem>>) attributes {dimension_semantics = [#tpu.dimension_semantics<parallel>, #tpu.dimension_semantics<parallel>], iteration_bounds = array<i64: 1, 2>, scalar_prefetch = 0 : i64, scratch_operands = 0 : i64, tpu.core_type = #tpu.core_type<tc>, window_params = [{transform_indices = @transform_0, window_bounds = array<i64: 1, 8, 1>}, {pipeline_mode = #tpu.pipeline_mode<synchronous>, transform_indices = @transform_1, window_bounds = array<i64: 96, 128>}, {transform_indices = @transform_2, window_bounds = array<i64: 8, 128>}, {pipeline_mode = #tpu.pipeline_mode<synchronous>, transform_indices = @transform_3, window_bounds = array<i64: 1, 128>}, {pipeline_mode = #tpu.pipeline_mode<synchronous>, transform_indices = @transform_4, window_bounds = array<i64: 1, 128>}, {transform_indices = @transform_5, window_bounds = array<i64: 1, 8, 128>}]} {
    %c0 = arith.constant 0 : index
    %c0_0 = arith.constant 0 : index
    %c0_1 = arith.constant 0 : index
    %0 = vector.load %arg2[%c0, %c0_0, %c0_1] : memref<1x8x1xi32, #tpu.memory_space<vmem>>, vector<1x8x1xi32>
    %1 = vector.shape_cast %0 : vector<1x8x1xi32> to vector<8x1xi32>
    %2 = tpu.iota {dimensions = array<i32: 1>} : vector<8x96xi32>
    %3 = vector.broadcast %1 : vector<8x1xi32> to vector<8x96xi32>
    %4 = arith.cmpi eq, %3, %2 : vector<8x96xi32>
    %5 = arith.extui %4 : vector<8x96xi1> to vector<8x96xi32>
    %6 = arith.sitofp %5 : vector<8x96xi32> to vector<8x96xf32>
    %c0_2 = arith.constant 0 : index
    %c0_3 = arith.constant 0 : index
    %7 = vector.load %arg3[%c0_2, %c0_3] : memref<96x128xf32, #tpu.memory_space<vmem>>, vector<96x128xf32>
    %cst = arith.constant dense<0.000000e+00> : vector<8x128xf32>
    %8 = tpu.matmul %6, %7, %cst {dimension_numbers = #tpu.dot_dimension_numbers<[1], [0], [0], [1], [0, 0, 1, 1], [], []>, precision = #tpu.contract_precision<fp32>} : vector<8x96xf32>, vector<96x128xf32>, vector<8x128xf32> -> vector<8x128xf32>
    %c0_4 = arith.constant 0 : index
    %c0_5 = arith.constant 0 : index
    %9 = vector.load %arg4[%c0_4, %c0_5] : memref<8x128xf32, #tpu.memory_space<vmem>>, vector<8x128xf32>
    %10 = arith.addf %8, %9 : vector<8x128xf32>
    %c0_6 = arith.constant 0 : index
    %c0_7 = arith.constant 0 : index
    %11 = vector.load %arg5[%c0_6, %c0_7] : memref<1x128xf32, #tpu.memory_space<vmem>>, vector<1x128xf32>
    %c0_8 = arith.constant 0 : index
    %c0_9 = arith.constant 0 : index
    %12 = vector.load %arg6[%c0_8, %c0_9] : memref<1x128xf32, #tpu.memory_space<vmem>>, vector<1x128xf32>
    %cst_10 = arith.constant dense<0.000000e+00> : vector<8xf32>
    %13 = vector.multi_reduction <add>, %10, %cst_10 [1] : vector<8x128xf32> to vector<8xf32>
    %14 = vector.shape_cast %13 : vector<8xf32> to vector<8x1xf32>
    %cst_11 = arith.constant 7.812500e-03 : f32
    %15 = vector.broadcast %cst_11 : f32 to vector<8x1xf32>
    %16 = arith.mulf %14, %15 : vector<8x1xf32>
    %17 = vector.broadcast %16 : vector<8x1xf32> to vector<8x128xf32>
    %18 = arith.subf %10, %17 : vector<8x128xf32>
    %19 = arith.mulf %18, %18 : vector<8x128xf32>
    %cst_12 = arith.constant dense<0.000000e+00> : vector<8xf32>
    %20 = vector.multi_reduction <add>, %19, %cst_12 [1] : vector<8x128xf32> to vector<8xf32>
    %21 = vector.shape_cast %20 : vector<8xf32> to vector<8x1xf32>
    %cst_13 = arith.constant 7.812500e-03 : f32
    %22 = vector.broadcast %cst_13 : f32 to vector<8x1xf32>
    %23 = arith.mulf %21, %22 : vector<8x1xf32>
    %cst_14 = arith.constant 9.99999996E-13 : f32
    %24 = vector.broadcast %cst_14 : f32 to vector<8x1xf32>
    %25 = arith.addf %23, %24 : vector<8x1xf32>
    %26 = math.rsqrt %25 : vector<8x1xf32>
    %27 = vector.broadcast %26 : vector<8x1xf32> to vector<8x128xf32>
    %28 = arith.mulf %18, %27 : vector<8x128xf32>
    %29 = vector.broadcast %11 : vector<1x128xf32> to vector<8x128xf32>
    %30 = arith.mulf %28, %29 : vector<8x128xf32>
    %31 = vector.broadcast %12 : vector<1x128xf32> to vector<8x128xf32>
    %32 = arith.addf %30, %31 : vector<8x128xf32>
    %c0_15 = arith.constant 0 : index
    %c0_16 = arith.constant 0 : index
    %c0_17 = arith.constant 0 : index
    %33 = vector.load %arg7[%c0_15, %c0_16, %c0_17] : memref<1x8x128xf32, #tpu.memory_space<vmem>>, vector<1x8x128xf32>
    %34 = vector.shape_cast %33 : vector<1x8x128xf32> to vector<8x128xf32>
    %35 = vector.shape_cast %32 : vector<8x128xf32> to vector<1x8x128xf32>
    tpu.vector_store %arg7[%c0_15, %c0_16, %c0_17], %35 {strides = array<i32>} : memref<1x8x128xf32, #tpu.memory_space<vmem>>, vector<1x8x128xf32>,
    return
  }
  func.func @transform_0(%arg0: i32, %arg1: i32) -> (i32, i32, i32) {
    %c0_i32 = arith.constant 0 : i32
    %c0_i32_0 = arith.constant 0 : i32
    return %arg1, %arg0, %c0_i32 : i32, i32, i32
  }
  func.func @transform_1(%arg0: i32, %arg1: i32) -> (i32, i32) {
    %c0_i32 = arith.constant 0 : i32
    %c0_i32_0 = arith.constant 0 : i32
    %c0_i32_1 = arith.constant 0 : i32
    return %c0_i32, %c0_i32_0 : i32, i32
  }
  func.func @transform_2(%arg0: i32, %arg1: i32) -> (i32, i32) {
    %c0_i32 = arith.constant 0 : i32
    %c0_i32_0 = arith.constant 0 : i32
    return %arg0, %c0_i32 : i32, i32
  }
  func.func @transform_3(%arg0: i32, %arg1: i32) -> (i32, i32) {
    %c0_i32 = arith.constant 0 : i32
    %c0_i32_0 = arith.constant 0 : i32
    %c0_i32_1 = arith.constant 0 : i32
    return %c0_i32, %c0_i32_0 : i32, i32
  }
  func.func @transform_4(%arg0: i32, %arg1: i32) -> (i32, i32) {
    %c0_i32 = arith.constant 0 : i32
    %c0_i32_0 = arith.constant 0 : i32
    %c0_i32_1 = arith.constant 0 : i32
    return %c0_i32, %c0_i32_0 : i32, i32
  }
  func.func @transform_5(%arg0: i32, %arg1: i32) -> (i32, i32, i32) {
    %c0_i32 = arith.constant 0 : i32
    %c0_i32_0 = arith.constant 0 : i32
    return %arg1, %arg0, %c0_i32 : i32, i32, i32
  }
}

</mosaic_0001>

<llo_original>
// kernel: tpu_custom_call.1
$region0: #{tpu_custom_call.1}
  #allocation0 [shape = 'u32[]', space=smem, size = 0x4, offset = 0x4, fixed_abs, tag = 'smem constant byte address 0x4 - core index']
  #allocation1 [shape = 'u32[144,128]{1,0:T(1,128)}', space=vmem, size = 0x12000, scoped, tag = 'internal scratch']
  %s0 = inlined_call_operand.vmem [shape: s32[2,8,1], index: 0, kind: input, shape index: {}]
  %s1 = inlined_call_operand.hbm [shape: f32[96,128], index: 1, kind: input, shape index: {}]
  %s2 = inlined_call_operand.vmem [shape: f32[8,128], index: 2, kind: input, shape index: {}]
  %s3 = inlined_call_operand.vmem [shape: f32[1,128], index: 3, kind: input, shape index: {}]
  %s4 = inlined_call_operand.vmem [shape: f32[1,128], index: 4, kind: input, shape index: {}]
  %s5 = inlined_call_operand.hbm [shape: f32[2,8,128], index: 5, kind: output, shape index: {}]
  %s6 = sld [smem:[#allocation0]]
  $region57: #{tpu_custom_call.1} parent=0
    _
  %s8 = ssub.s32 1, %s6
  %s9 = scalar_select 0, %s8, %s6
  $region1: #{tpu_custom_call.1} parent=0
    #allocation2 [shape = 'u8[49152]{0}', space=vmem, size = 0xc000, scoped, tag = 'input window, operand 1, single buffered']
    #allocation3 [shape = 's32[2]{0}', space=sflag, size = 0x8, scoped, tag = 'scoped memory for tpu_custom_call.1']
    #allocation4 [shape = 's32[2]{0}', space=sflag, size = 0x8, scoped, tag = 'scoped memory for tpu_custom_call.1']
    #allocation5 [shape = 'u8[8192]{0}', space=vmem, size = 0x2000, scoped, tag = 'output window, operand 0']
    %10 = vsyncpa [#allocation3], 0
    %11 = vsyncpa [#allocation4], 0
    %s12 = scalar_lea.sflag [#allocation4], 1
    %13 = vsyncpa %s12, 0
    loop: start=0, step=1, limit=4
    $region2: #{tpu_custom_call.1} parent=1 // loop_pre_header
      _
    $region3: #{tpu_custom_call.1} parent=1 // loop_header
      %s15 = sphi 0, %s19
      %p16 = scmp.ge.s32.totalorder %s15, 4
      %s22 = sphi 0, %s34
      %s23 = sphi 0, %s30
      %s24 = sphi 0, %s22
      %s25 = sphi 0, %s23
      %s26 = sphi 0, %s24
      %s27 = sphi 0, %s25
      %s39 = sphi 0, %s41
      %s42 = sphi 0, %s39
      %s43 = sphi 0, %s42
      %s59 = sphi 0, %s43
      %s63 = sphi 0, %s63
      %s65 = sphi 0, %s63
      %s66 = sphi 0, %s65
      %s80 = sphi 0, %s66
      %s86 = sphi 0, %s88
      %s89 = sphi 0, %s86
      %s90 = sphi 0, %s89
      %s106 = sphi 0, %s90
      %s110 = sphi 0, %s110
      %s112 = sphi 0, %s110
      %s113 = sphi 0, %s112
      %s127 = sphi 0, %s113
      %s131 = sphi 0, %s131
      %s133 = sphi 0, %s131
      %s134 = sphi 0, %s133
      %s148 = sphi 0, %s134
      %s156 = sphi 0, %s158
      %s159 = sphi 0, %s156
      %s160 = sphi 0, %s159
      %s176 = sphi 0, %s160
    $region4: #{tpu_custom_call.1} parent=1 // loop_header_branch
      %18 = sbr.rel (%p16) target = $region8
    $region5: #{tpu_custom_call.1} parent=1 // loop_body
      %s20 = ssub.s32 %s15, 1
      %s21 = ssub.s32 %s15, 2
      %s28 = sadd.s32 1, %s23
      %p29 = scmp.ge.s32.totalorder %s28, 2
      %s30 = scalar_select %p29, 0, %s28
      %s31 = sadd.s32 1, %s22
      %s32 = scalar_select %p29, %s31, %s22
      %p33 = scmp.ge.s32.totalorder %s32, 1
      %s34 = scalar_select %p33, 0, %s32
      %s35 = ssub.s32 %s23, %s30
      %s36 = ssub.s32 %s22, %s34
      %s37 = sor.u32 %s35, %s36
      %p38 = scmp.eq.s32.totalorder %s37, 0
      %s40 = sadd.s32 %s39, 1
      %s41 = scalar_select %p38, %s39, %s40
      %p44 = pneg %p38
      %p45 = scmp.eq.s32.totalorder %s15, 1
      %p46 = por %p44, %p45
      %p47 = scmp.ne.s32.totalorder %s39, %s42
      %p48 = scmp.eq.s32.totalorder %s15, 0
      %p49 = por %p47, %p48
      %p50 = scmp.ne.s32.totalorder %s39, %s42
      %p51 = scmp.eq.s32.totalorder %s20, 1
      %p52 = por %p50, %p51
      %p53 = scmp.ne.s32.totalorder %s42, %s43
      %p54 = scmp.eq.s32.totalorder %s20, 0
      %p55 = por %p53, %p54
      %p56 = scmp.ne.s32.totalorder %s42, %s43
      %p57 = scmp.eq.s32.totalorder %s21, 1
      %p58 = por %p56, %p57
      %p60 = scmp.ne.s32.totalorder %s43, %s59
      %p61 = scmp.eq.s32.totalorder %s21, 0
      %p62 = por %p60, %p61
      %s64 = sadd.s32 %s63, 1
      %p67 = scmp.eq.s32.totalorder %s15, 1
      %p68 = scmp.ne.s32.totalorder %s63, %s65
      %p69 = scmp.eq.s32.totalorder %s15, 0
      %p70 = por %p68, %p69
      %p71 = scmp.ne.s32.totalorder %s63, %s65
      %p72 = scmp.eq.s32.totalorder %s20, 1
      %p73 = por %p71, %p72
      %p74 = scmp.ne.s32.totalorder %s65, %s66
      %p75 = scmp.eq.s32.totalorder %s20, 0
      %p76 = por %p74, %p75
      %p77 = scmp.ne.s32.totalorder %s65, %s66
      %p78 = scmp.eq.s32.totalorder %s21, 1
      %p79 = por %p77, %p78
      %p81 = scmp.ne.s32.totalorder %s66, %s80
      %p82 = scmp.eq.s32.totalorder %s21, 0
      %p83 = por %p81, %p82
      %s84 = ssub.s32 %s22, %s34
      %p85 = scmp.eq.s32.totalorder %s84, 0
      %s87 = sadd.s32 %s86, 1
      %s88 = scalar_select %p85, %s86, %s87
      %p91 = pneg %p85
      %p92 = scmp.eq.s32.totalorder %s15, 1
      %p93 = por %p91, %p92
      %p94 = scmp.ne.s32.totalorder %s86, %s89
      %p95 = scmp.eq.s32.totalorder %s15, 0
      %p96 = por %p94, %p95
      %p97 = scmp.ne.s32.totalorder %s86, %s89
      %p98 = scmp.eq.s32.totalorder %s20, 1
      %p99 = por %p97, %p98
      %p100 = scmp.ne.s32.totalorder %s89, %s90
      %p101 = scmp.eq.s32.totalorder %s20, 0
      %p102 = por %p100, %p101
      %p103 = scmp.ne.s32.totalorder %s89, %s90
      %p104 = scmp.eq.s32.totalorder %s21, 1
      %p105 = por %p103, %p104
      %p107 = scmp.ne.s32.totalorder %s90, %s106
      %p108 = scmp.eq.s32.totalorder %s21, 0
      %p109 = por %p107, %p108
      %s111 = sadd.s32 %s110, 1
      %p114 = scmp.eq.s32.totalorder %s15, 1
      %p115 = scmp.ne.s32.totalorder %s110, %s112
      %p116 = scmp.eq.s32.totalorder %s15, 0
      %p117 = por %p115, %p116
      %p118 = scmp.ne.s32.totalorder %s110, %s112
      %p119 = scmp.eq.s32.totalorder %s20, 1
      %p120 = por %p118, %p119
      %p121 = scmp.ne.s32.totalorder %s112, %s113
      %p122 = scmp.eq.s32.totalorder %s20, 0
      %p123 = por %p121, %p122
      %p124 = scmp.ne.s32.totalorder %s112, %s113
      %p125 = scmp.eq.s32.totalorder %s21, 1
      %p126 = por %p124, %p125
      %p128 = scmp.ne.s32.totalorder %s113, %s127
      %p129 = scmp.eq.s32.totalorder %s21, 0
      %p130 = por %p128, %p129
      %s132 = sadd.s32 %s131, 1
      %p135 = scmp.eq.s32.totalorder %s15, 1
      %p136 = scmp.ne.s32.totalorder %s131, %s133
      %p137 = scmp.eq.s32.totalorder %s15, 0
      %p138 = por %p136, %p137
      %p139 = scmp.ne.s32.totalorder %s131, %s133
      %p140 = scmp.eq.s32.totalorder %s20, 1
      %p141 = por %p139, %p140
      %p142 = scmp.ne.s32.totalorder %s133, %s134
      %p143 = scmp.eq.s32.totalorder %s20, 0
      %p144 = por %p142, %p143
      %p145 = scmp.ne.s32.totalorder %s133, %s134
      %p146 = scmp.eq.s32.totalorder %s21, 1
      %p147 = por %p145, %p146
      %p149 = scmp.ne.s32.totalorder %s134, %s148
      %p150 = scmp.eq.s32.totalorder %s21, 0
      %p151 = por %p149, %p150
      %s152 = ssub.s32 %s23, %s30
      %s153 = ssub.s32 %s22, %s34
      %s154 = sor.u32 %s152, %s153
      %p155 = scmp.eq.s32.totalorder %s154, 0
      %s157 = sadd.s32 %s156, 1
      %s158 = scalar_select %p155, %s156, %s157
      %p161 = pneg %p155
      %p162 = scmp.eq.s32.totalorder %s15, 1
      %p163 = por %p161, %p162
      %p164 = scmp.ne.s32.totalorder %s156, %s159
      %p165 = scmp.eq.s32.totalorder %s15, 0
      %p166 = por %p164, %p165
      %p167 = scmp.ne.s32.totalorder %s156, %s159
      %p168 = scmp.eq.s32.totalorder %s20, 1
      %p169 = por %p167, %p168
      %p170 = scmp.ne.s32.totalorder %s159, %s160
      %p171 = scmp.eq.s32.totalorder %s20, 0
      %p172 = por %p170, %p171
      %p173 = scmp.ne.s32.totalorder %s159, %s160
      %p174 = scmp.eq.s32.totalorder %s21, 1
      %p175 = por %p173, %p174
      %p177 = scmp.ne.s32.totalorder %s160, %s176
      %p178 = scmp.eq.s32.totalorder %s21, 0
      %p179 = por %p177, %p178
      %p180 = scmp.le.s32.totalorder 1, %s15
      %p181 = scmp.lt.s32.totalorder %s15, 3
      %p182 = pnand %p180, %p181
      %p183 = pneg %p182
      // Predicated region
      $region9: #{tpu_custom_call.1} parent=5 // pred_check
        _
      $region10: #{tpu_custom_call.1} parent=5 // pred_check_branch
        %185 = sbr.rel (%p182) target = $region12
      $region11: #{tpu_custom_call.1} parent=5 // pred_region
        %s186 = ssub.s32 %s15, 1
        // Predicated region
        $region13: #{tpu_custom_call.1} parent=11 // pred_check
          %p187 = pneg %p76
        $region14: #{tpu_custom_call.1} parent=11 // pred_check_branch
          %189 = sbr.rel (%p187) target = $region16
        $region15: #{tpu_custom_call.1} parent=11 // pred_region
          %s191 = ssub.s32 1536, 1536
          %192 = vsyncadd [#allocation3], %s191
          %s193 = sshll.u32 [#allocation2], 4
          %s194 = int_to_ptr.vmem [resolvable:$true] %s193
          %199 = dma.hbm_to_vmem [thread:$0]  %s1, 1536, %s194, [#allocation3], 128, 128, 8
        $region16: #{tpu_custom_call.1} parent=11 // pred_fallthru
          _
        // Predicated region
        $region17: #{tpu_custom_call.1} parent=11 // pred_check
          %p200 = pneg %p102
        $region18: #{tpu_custom_call.1} parent=11 // pred_check_branch
          %202 = sbr.rel (%p200) target = $region20
        $region19: #{tpu_custom_call.1} parent=11 // pred_region
          %p203 = scmp.lt.s32.totalorder %s24, 0
          %s204 = scalar_select %p203, %s24, 0
          %s205 = smul.addr %s204, 8
          %s206 = scalar_lea.vmem %s2, %s205
        $region20: #{tpu_custom_call.1} parent=11 // pred_fallthru
          _
        // Predicated region
        $region21: #{tpu_custom_call.1} parent=11 // pred_check
          %p207 = pneg %p123
        $region22: #{tpu_custom_call.1} parent=11 // pred_check_branch
          %209 = sbr.rel (%p207) target = $region24
        $region23: #{tpu_custom_call.1} parent=11 // pred_region
          _
        $region24: #{tpu_custom_call.1} parent=11 // pred_fallthru
          _
        // Predicated region
        $region25: #{tpu_custom_call.1} parent=11 // pred_check
          %p210 = pneg %p144
        $region26: #{tpu_custom_call.1} parent=11 // pred_check_branch
          %212 = sbr.rel (%p210) target = $region28
        $region27: #{tpu_custom_call.1} parent=11 // pred_region
          _
        $region28: #{tpu_custom_call.1} parent=11 // pred_fallthru
          _
      $region12: #{tpu_custom_call.1} parent=5 // pred_fallthru
        _
      %p213 = scmp.lt.s32.totalorder %s15, 2
      // Predicated region
      $region29: #{tpu_custom_call.1} parent=5 // pred_check
        %p214 = pneg %p213
      $region30: #{tpu_custom_call.1} parent=5 // pred_check_branch
        %216 = sbr.rel (%p214) target = $region32
      $region31: #{tpu_custom_call.1} parent=5 // pred_region
        // Predicated region
        $region33: #{tpu_custom_call.1} parent=31 // pred_check
          %p217 = pneg %p49
        $region34: #{tpu_custom_call.1} parent=31 // pred_check_branch
          %219 = sbr.rel (%p217) target = $region36
        $region35: #{tpu_custom_call.1} parent=31 // pred_region
          %p220 = scmp.lt.s32.totalorder %s23, 1
          %s221 = scalar_select %p220, %s23, 1
          %p222 = scmp.lt.s32.totalorder %s22, 0
          %s223 = scalar_select %p222, %s22, 0
          %s224 = sadd.s32 %s223, %s221
          %s225 = smul.addr %s224, 8
          %s226 = scalar_lea.vmem %s0, %s225
        $region36: #{tpu_custom_call.1} parent=31 // pred_fallthru
          _
      $region32: #{tpu_custom_call.1} parent=5 // pred_fallthru
        _
      %p227 = scmp.le.s32.totalorder 1, %s15
      %p228 = scmp.lt.s32.totalorder %s15, 3
      %p229 = pnand %p227, %p228
      %p230 = pneg %p229
      // Predicated region
      $region37: #{tpu_custom_call.1} parent=5 // pred_check
        _
      $region38: #{tpu_custom_call.1} parent=5 // pred_check_branch
        %232 = sbr.rel (%p229) target = $region40
      $region39: #{tpu_custom_call.1} parent=5 // pred_region
        %s233 = ssub.s32 %s15, 1
        // Predicated region
        $region41: #{tpu_custom_call.1} parent=39 // pred_check
          %p234 = pneg %p76
        $region42: #{tpu_custom_call.1} parent=39 // pred_check_branch
          %236 = sbr.rel (%p234) target = $region44
        $region43: #{tpu_custom_call.1} parent=39 // pred_region
          %237 = dma.done [#allocation3], 1536
        $region44: #{tpu_custom_call.1} parent=39 // pred_fallthru
          _
        %p238 = scmp.lt.s32.totalorder %s25, 1
        %s239 = scalar_select %p238, %s25, 1
        %p240 = scmp.lt.s32.totalorder %s24, 0
        %s241 = scalar_select %p240, %s24, 0
        %s242 = sadd.s32 %s241, %s239
        %s243 = smul.addr %s242, 8
        %s244 = scalar_lea.vmem %s0, %s243
        %p245 = pneg %p55
        %p246 = pneg %p52
        %p247 = pneg %p76
        %p248 = pneg %p73
        %p249 = scmp.lt.s32.totalorder %s24, 0
        %s250 = scalar_select %p249, %s24, 0
        %s251 = smul.addr %s250, 8
        %s252 = scalar_lea.vmem %s2, %s251
        %p253 = pneg %p102
        %p254 = pneg %p99
        %p255 = pneg %p123
        %p256 = pneg %p120
        %p257 = pneg %p144
        %p258 = pneg %p141
        %p259 = pneg %p172
        %p260 = pneg %p169
        %s261 = sand.u32 %s159, 1
        %s262 = scalar_lea.sflag [#allocation4], %s261
        %s263 = sand.u32 %s159, 1
        %s264 = smul.addr %s263, 8
        %s265 = scalar_lea.vmem [#allocation5], %s264
        %p266 = scmp.lt.s32.totalorder %s25, 1
        %s267 = scalar_select %p266, %s25, 1
        %p268 = scmp.lt.s32.totalorder %s24, 0
        %s269 = scalar_select %p268, %s24, 0
        %s270 = sadd.s32 %s269, %s267
        %s271 = smul.addr %s270, 8
        %s272 = scalar_lea.vmem %s0, %s271
        %p273 = scmp.lt.s32.totalorder %s24, 0
        %s274 = scalar_select %p273, %s24, 0
        %s275 = smul.addr %s274, 8
        %s276 = scalar_lea.vmem %s2, %s275
        %v277 = vld [vmem:[%s272] sm:$0xff]
        %v278 = vlaneseq
        %v279 = vand.u32 %v278, 127
        %280 = vset.pattern.permute.xlu0 0
        %281 = vperm.xlu0 %280, %v277
        %v282 = vpop.permute.xlu0 %281
        %vm283 = vcmp.eq.s32.totalorder %v282, %v279
        %v284 = vsel %vm283, 1, 0
        %v285 = vcvt.s32.f32 %v284
        %v286 = vld [vmem:[#allocation2] sm:$0xff]
        %v287 = vld [vmem:[#allocation2 + $0x8] sm:$0xff]
        %v288 = vld [vmem:[#allocation2 + $0x10] sm:$0xff]
        %v289 = vld [vmem:[#allocation2 + $0x18] sm:$0xff]
        %v290 = vld [vmem:[#allocation2 + $0x20] sm:$0xff]
        %v291 = vld [vmem:[#allocation2 + $0x28] sm:$0xff]
        %v292 = vld [vmem:[#allocation2 + $0x30] sm:$0xff]
        %v293 = vld [vmem:[#allocation2 + $0x38] sm:$0xff]
        %v294 = vld [vmem:[#allocation2 + $0x40] sm:$0xff]
        %v295 = vld [vmem:[#allocation2 + $0x48] sm:$0xff]
        %v296 = vld [vmem:[#allocation2 + $0x50] sm:$0xff]
        %v297 = vld [vmem:[#allocation2 + $0x58] sm:$0xff]
        %v298 = vld [vmem:[%s276] sm:$0xff]
        %vm299 = vcmask 785408
        %v301 = vsel %vm299, %v285, 0
        %303 = vmatprep.subr.mxu0 0.0
        %304 = vmatpush1.msra.mxu0 0.0
        %305 = vmatprep.subr.mxu0 0.0
        %306 = vmatpush1.msra.mxu0 0.0
        %307 = vmatprep.subr.mxu0 0.0
        %308 = vmatpush1.msra.mxu0 0.0
        %309 = vmatprep.subr.mxu0 0.0
        %310 = vmatpush1.msra.mxu0 0.0
        %311 = vmatprep.subr.mxu0 0.0
        %v312 = vand.u32 %v297, 4294901760
        %313 = vmatpush1.msra.mxu0 %v312
        %314 = vmatprep.subr.mxu0 0.0
        %v315 = vand.u32 %v296, 4294901760
        %316 = vmatpush1.msra.mxu0 %v315
        %317 = vmatprep.subr.mxu0 0.0
        %v318 = vand.u32 %v295, 4294901760
        %319 = vmatpush1.msra.mxu0 %v318
        %320 = vmatprep.subr.mxu0 0.0
        %v321 = vand.u32 %v294, 4294901760
        %322 = vmatpush1.msra.mxu0 %v321
        %323 = vmatprep.subr.mxu0 0.0
        %v324 = vand.u32 %v293, 4294901760
        %325 = vmatpush1.msra.mxu0 %v324
        %326 = vmatprep.subr.mxu0 0.0
        %v327 = vand.u32 %v292, 4294901760
        %328 = vmatpush1.msra.mxu0 %v327
        %329 = vmatprep.subr.mxu0 0.0
        %v330 = vand.u32 %v291, 4294901760
        %331 = vmatpush1.msra.mxu0 %v330
        %332 = vmatprep.subr.mxu0 0.0
        %v333 = vand.u32 %v290, 4294901760
        %334 = vmatpush1.msra.mxu0 %v333
        %335 = vmatprep.subr.mxu0 0.0
        %v336 = vand.u32 %v289, 4294901760
        %337 = vmatpush1.msra.mxu0 %v336
        %338 = vmatprep.subr.mxu0 0.0
        %v339 = vand.u32 %v288, 4294901760
        %340 = vmatpush1.msra.mxu0 %v339
        %341 = vmatprep.subr.mxu0 0.0
        %v342 = vand.u32 %v287, 4294901760
        %343 = vmatpush1.msra.mxu0 %v342
        %344 = vmatprep.subr.mxu0 0.0
        %v345 = vand.u32 %v286, 4294901760
        %346 = vmatpush1.msra.mxu0 %v345
        %347 = vmatprep.subr.mxu0 0.0
        %348 = vmatpush2.msra.mxu0 0.0
        %349 = vmatprep.subr.mxu0 0.0
        %350 = vmatpush2.msra.mxu0 0.0
        %351 = vmatprep.subr.mxu0 0.0
        %352 = vmatpush2.msra.mxu0 0.0
        %353 = vmatprep.subr.mxu0 0.0
        %354 = vmatpush2.msra.mxu0 0.0
        %355 = vmatprep.subr.mxu0 0.0
        %356 = vmatpush2.msra.mxu0 0.0
        %357 = vmatprep.subr.mxu0 0.0
        %358 = vmatpush2.msra.mxu0 0.0
        %359 = vmatprep.subr.mxu0 0.0
        %360 = vmatpush2.msra.mxu0 0.0
        %361 = vmatprep.subr.mxu0 0.0
        %362 = vmatpush2.msra.mxu0 0.0
        %363 = vmatprep.subr.mxu0 0.0
        %364 = vmatpush2.msra.mxu0 0.0
        %365 = vmatprep.subr.mxu0 0.0
        %366 = vmatpush2.msra.mxu0 0.0
        %367 = vmatprep.subr.mxu0 0.0
        %368 = vmatpush2.msra.mxu0 0.0
        %369 = vmatprep.subr.mxu0 0.0
        %370 = vmatpush2.msra.mxu0 0.0
        %371 = vmatprep.subr.mxu0 0.0
        %372 = vmatpush2.msra.mxu0 0.0
        %373 = vmatprep.subr.mxu0 0.0
        %374 = vmatpush2.msra.mxu0 0.0
        %375 = vmatprep.subr.mxu0 0.0
        %376 = vmatpush2.msra.mxu0 0.0
        %377 = vmatprep.subr.mxu0 0.0
        %378 = vmatpush2.msra.mxu0 0.0
        %379 = vmatprep.mubr.f32.mxu0 0.0
        %v380 = vand.u32 %v301, 4294901760
        %v381 = vsub.f32 %v301, %v380
        %v382 = vand.u32 %v381, 4294901760
        %v383 = vsub.f32 %v381, %v382
        %v384 = vand.u32 %v383, 4294901760
        %385 = vmatmul.mubr.f32.gmra.mxu0 %v384
        %v386 = vpop.f32.mrf.mxu0
        %v387 = vadd.f32 %v298, %v386
        %v388 = vpop.f32.mrf.mxu0
        %389 = vdwg.mxu0
        %390 = vmatprep.subr.mxu0 0.0
        %391 = vmatpush1.msra.mxu0 0.0
        %392 = vmatprep.subr.mxu0 0.0
        %393 = vmatpush1.msra.mxu0 0.0
        %394 = vmatprep.subr.mxu0 0.0
        %395 = vmatpush1.msra.mxu0 0.0
        %396 = vmatprep.subr.mxu0 0.0
        %397 = vmatpush1.msra.mxu0 0.0
        %398 = vmatprep.subr.mxu0 0.0
        %v399 = vand.u32 %v297, 4294901760
        %v400 = vsub.f32 %v297, %v399
        %v401 = vand.u32 %v400, 4294901760
        %v402 = vsub.f32 %v400, %v401
        %v403 = vand.u32 %v402, 4294901760
        %404 = vmatpush1.msra.mxu0 %v403
        %405 = vmatprep.subr.mxu0 0.0
        %v406 = vand.u32 %v296, 4294901760
        %v407 = vsub.f32 %v296, %v406
        %v408 = vand.u32 %v407, 4294901760
        %v409 = vsub.f32 %v407, %v408
        %v410 = vand.u32 %v409, 4294901760
        %411 = vmatpush1.msra.mxu0 %v410
        %412 = vmatprep.subr.mxu0 0.0
        %v413 = vand.u32 %v295, 4294901760
        %v414 = vsub.f32 %v295, %v413
        %v415 = vand.u32 %v414, 4294901760
        %v416 = vsub.f32 %v414, %v415
        %v417 = vand.u32 %v416, 4294901760
        %418 = vmatpush1.msra.mxu0 %v417
        %419 = vmatprep.subr.mxu0 0.0
        %v420 = vand.u32 %v294, 4294901760
        %v421 = vsub.f32 %v294, %v420
        %v422 = vand.u32 %v421, 4294901760
        %v423 = vsub.f32 %v421, %v422
        %v424 = vand.u32 %v423, 4294901760
        %425 = vmatpush1.msra.mxu0 %v424
        %426 = vmatprep.subr.mxu0 0.0
        %v427 = vand.u32 %v293, 4294901760
        %v428 = vsub.f32 %v293, %v427
        %v429 = vand.u32 %v428, 4294901760
        %v430 = vsub.f32 %v428, %v429
        %v431 = vand.u32 %v430, 4294901760
        %432 = vmatpush1.msra.mxu0 %v431
        %433 = vmatprep.subr.mxu0 0.0
        %v434 = vand.u32 %v292, 4294901760
        %v435 = vsub.f32 %v292, %v434
        %v436 = vand.u32 %v435, 4294901760
        %v437 = vsub.f32 %v435, %v436
        %v438 = vand.u32 %v437, 4294901760
        %439 = vmatpush1.msra.mxu0 %v438
        %440 = vmatprep.subr.mxu0 0.0
        %v441 = vand.u32 %v291, 4294901760
        %v442 = vsub.f32 %v291, %v441
        %v443 = vand.u32 %v442, 4294901760
        %v444 = vsub.f32 %v442, %v443
        %v445 = vand.u32 %v444, 4294901760
        %446 = vmatpush1.msra.mxu0 %v445
        %447 = vmatprep.subr.mxu0 0.0
        %v448 = vand.u32 %v290, 4294901760
        %v449 = vsub.f32 %v290, %v448
        %v450 = vand.u32 %v449, 4294901760
        %v451 = vsub.f32 %v449, %v450
        %v452 = vand.u32 %v451, 4294901760
        %453 = vmatpush1.msra.mxu0 %v452
        %454 = vmatprep.subr.mxu0 0.0
        %v455 = vand.u32 %v289, 4294901760
        %v456 = vsub.f32 %v289, %v455
        %v457 = vand.u32 %v456, 4294901760
        %v458 = vsub.f32 %v456, %v457
        %v459 = vand.u32 %v458, 4294901760
        %460 = vmatpush1.msra.mxu0 %v459
        %461 = vmatprep.subr.mxu0 0.0
        %v462 = vand.u32 %v288, 4294901760
        %v463 = vsub.f32 %v288, %v462
        %v464 = vand.u32 %v463, 4294901760
        %v465 = vsub.f32 %v463, %v464
        %v466 = vand.u32 %v465, 4294901760
        %467 = vmatpush1.msra.mxu0 %v466
        %468 = vmatprep.subr.mxu0 0.0
        %v469 = vand.u32 %v287, 4294901760
        %v470 = vsub.f32 %v287, %v469
        %v471 = vand.u32 %v470, 4294901760
        %v472 = vsub.f32 %v470, %v471
        %v473 = vand.u32 %v472, 4294901760
        %474 = vmatpush1.msra.mxu0 %v473
        %475 = vmatprep.subr.mxu0 0.0
        %v476 = vand.u32 %v286, 4294901760
        %v477 = vsub.f32 %v286, %v476
        %v478 = vand.u32 %v477, 4294901760
        %v479 = vsub.f32 %v477, %v478
        %v480 = vand.u32 %v479, 4294901760
        %481 = vmatpush1.msra.mxu0 %v480
        %482 = vmatprep.subr.mxu0 0.0
        %483 = vmatpush2.msra.mxu0 0.0
        %484 = vmatprep.subr.mxu0 0.0
        %485 = vmatpush2.msra.mxu0 0.0
        %486 = vmatprep.subr.mxu0 0.0
        %487 = vmatpush2.msra.mxu0 0.0
        %488 = vmatprep.subr.mxu0 0.0
        %489 = vmatpush2.msra.mxu0 0.0
        %490 = vmatprep.subr.mxu0 0.0
        %491 = vmatpush2.msra.mxu0 0.0
        %492 = vmatprep.subr.mxu0 0.0
        %493 = vmatpush2.msra.mxu0 0.0
        %494 = vmatprep.subr.mxu0 0.0
        %495 = vmatpush2.msra.mxu0 0.0
        %496 = vmatprep.subr.mxu0 0.0
        %497 = vmatpush2.msra.mxu0 0.0
        %498 = vmatprep.subr.mxu0 0.0
        %499 = vmatpush2.msra.mxu0 0.0
        %500 = vmatprep.subr.mxu0 0.0
        %501 = vmatpush2.msra.mxu0 0.0
        %502 = vmatprep.subr.mxu0 0.0
        %503 = vmatpush2.msra.mxu0 0.0
        %504 = vmatprep.subr.mxu0 0.0
        %505 = vmatpush2.msra.mxu0 0.0
        %506 = vmatprep.subr.mxu0 0.0
        %507 = vmatpush2.msra.mxu0 0.0
        %508 = vmatprep.subr.mxu0 0.0
        %509 = vmatpush2.msra.mxu0 0.0
        %510 = vmatprep.subr.mxu0 0.0
        %511 = vmatpush2.msra.mxu0 0.0
        %512 = vmatprep.subr.mxu0 0.0
        %513 = vmatpush2.msra.mxu0 0.0
        %514 = vmatprep.mubr.f32.mxu0 0.0
        %v515 = vand.u32 %v301, 4294901760
        %516 = vmatmul.mubr.f32.gmra.mxu0 %v515
        %v517 = vpop.f32.mrf.mxu0
        %v518 = vadd.f32 %v387, %v517
        %v519 = vpop.f32.mrf.mxu0
        %520 = vdwg.mxu0
        %521 = vmatprep.subr.mxu0 0.0
        %522 = vmatpush1.msra.mxu0 0.0
        %523 = vmatprep.subr.mxu0 0.0
        %524 = vmatpush1.msra.mxu0 0.0
        %525 = vmatprep.subr.mxu0 0.0
        %526 = vmatpush1.msra.mxu0 0.0
        %527 = vmatprep.subr.mxu0 0.0
        %528 = vmatpush1.msra.mxu0 0.0
        %529 = vmatprep.subr.mxu0 0.0
        %v530 = vand.u32 %v297, 4294901760
        %v531 = vsub.f32 %v297, %v530
        %532 = vmatpush1.msra.mxu0 %v531
        %533 = vmatprep.subr.mxu0 0.0
        %v534 = vand.u32 %v296, 4294901760
        %v535 = vsub.f32 %v296, %v534
        %536 = vmatpush1.msra.mxu0 %v535
        %537 = vmatprep.subr.mxu0 0.0
        %v538 = vand.u32 %v295, 4294901760
        %v539 = vsub.f32 %v295, %v538
        %540 = vmatpush1.msra.mxu0 %v539
        %541 = vmatprep.subr.mxu0 0.0
        %v542 = vand.u32 %v294, 4294901760
        %v543 = vsub.f32 %v294, %v542
        %544 = vmatpush1.msra.mxu0 %v543
        %545 = vmatprep.subr.mxu0 0.0
        %v546 = vand.u32 %v293, 4294901760
        %v547 = vsub.f32 %v293, %v546
        %548 = vmatpush1.msra.mxu0 %v547
        %549 = vmatprep.subr.mxu0 0.0
        %v550 = vand.u32 %v292, 4294901760
        %v551 = vsub.f32 %v292, %v550
        %552 = vmatpush1.msra.mxu0 %v551
        %553 = vmatprep.subr.mxu0 0.0
        %v554 = vand.u32 %v291, 4294901760
        %v555 = vsub.f32 %v291, %v554
        %556 = vmatpush1.msra.mxu0 %v555
        %557 = vmatprep.subr.mxu0 0.0
        %v558 = vand.u32 %v290, 4294901760
        %v559 = vsub.f32 %v290, %v558
        %560 = vmatpush1.msra.mxu0 %v559
        %561 = vmatprep.subr.mxu0 0.0
        %v562 = vand.u32 %v289, 4294901760
        %v563 = vsub.f32 %v289, %v562
        %564 = vmatpush1.msra.mxu0 %v563
        %565 = vmatprep.subr.mxu0 0.0
        %v566 = vand.u32 %v288, 4294901760
        %v567 = vsub.f32 %v288, %v566
        %568 = vmatpush1.msra.mxu0 %v567
        %569 = vmatprep.subr.mxu0 0.0
        %v570 = vand.u32 %v287, 4294901760
        %v571 = vsub.f32 %v287, %v570
        %572 = vmatpush1.msra.mxu0 %v571
        %573 = vmatprep.subr.mxu0 0.0
        %v574 = vand.u32 %v286, 4294901760
        %v575 = vsub.f32 %v286, %v574
        %576 = vmatpush1.msra.mxu0 %v575
        %577 = vmatprep.subr.mxu0 0.0
        %578 = vmatpush2.msra.mxu0 0.0
        %579 = vmatprep.subr.mxu0 0.0
        %580 = vmatpush2.msra.mxu0 0.0
        %581 = vmatprep.subr.mxu0 0.0
        %582 = vmatpush2.msra.mxu0 0.0
        %583 = vmatprep.subr.mxu0 0.0
        %584 = vmatpush2.msra.mxu0 0.0
        %585 = vmatprep.subr.mxu0 0.0
        %586 = vmatpush2.msra.mxu0 0.0
        %587 = vmatprep.subr.mxu0 0.0
        %588 = vmatpush2.msra.mxu0 0.0
        %589 = vmatprep.subr.mxu0 0.0
        %590 = vmatpush2.msra.mxu0 0.0
        %591 = vmatprep.subr.mxu0 0.0
        %592 = vmatpush2.msra.mxu0 0.0
        %593 = vmatprep.subr.mxu0 0.0
        %594 = vmatpush2.msra.mxu0 0.0
        %595 = vmatprep.subr.mxu0 0.0
        %596 = vmatpush2.msra.mxu0 0.0
        %597 = vmatprep.subr.mxu0 0.0
        %598 = vmatpush2.msra.mxu0 0.0
        %599 = vmatprep.subr.mxu0 0.0
        %600 = vmatpush2.msra.mxu0 0.0
        %601 = vmatprep.subr.mxu0 0.0
        %602 = vmatpush2.msra.mxu0 0.0
        %603 = vmatprep.subr.mxu0 0.0
        %604 = vmatpush2.msra.mxu0 0.0
        %605 = vmatprep.subr.mxu0 0.0
        %606 = vmatpush2.msra.mxu0 0.0
        %607 = vmatprep.subr.mxu0 0.0
        %608 = vmatpush2.msra.mxu0 0.0
        %609 = vmatprep.mubr.f32.mxu0 0.0
        %v610 = vand.u32 %v301, 4294901760
        %v611 = vsub.f32 %v301, %v610
        %612 = vmatmul.mubr.f32.gmra.mxu0 %v611
        %v613 = vpop.f32.mrf.mxu0
        %v614 = vadd.f32 %v518, %v613
        %v615 = vpop.f32.mrf.mxu0
        %616 = vdwg.mxu0
        %617 = vmatprep.subr.mxu0 0.0
        %618 = vmatpush1.msra.mxu0 0.0
        %619 = vmatprep.subr.mxu0 0.0
        %620 = vmatpush1.msra.mxu0 0.0
        %621 = vmatprep.subr.mxu0 0.0
        %622 = vmatpush1.msra.mxu0 0.0
        %623 = vmatprep.subr.mxu0 0.0
        %624 = vmatpush1.msra.mxu0 0.0
        %625 = vmatprep.subr.mxu0 0.0
        %v626 = vand.u32 %v297, 4294901760
        %627 = vmatpush1.msra.mxu0 %v626
        %628 = vmatprep.subr.mxu0 0.0
        %v629 = vand.u32 %v296, 4294901760
        %630 = vmatpush1.msra.mxu0 %v629
        %631 = vmatprep.subr.mxu0 0.0
        %v632 = vand.u32 %v295, 4294901760
        %633 = vmatpush1.msra.mxu0 %v632
        %634 = vmatprep.subr.mxu0 0.0
        %v635 = vand.u32 %v294, 4294901760
        %636 = vmatpush1.msra.mxu0 %v635
        %637 = vmatprep.subr.mxu0 0.0
        %v638 = vand.u32 %v293, 4294901760
        %639 = vmatpush1.msra.mxu0 %v638
        %640 = vmatprep.subr.mxu0 0.0
        %v641 = vand.u32 %v292, 4294901760
        %642 = vmatpush1.msra.mxu0 %v641
        %643 = vmatprep.subr.mxu0 0.0
        %v644 = vand.u32 %v291, 4294901760
        %645 = vmatpush1.msra.mxu0 %v644
        %646 = vmatprep.subr.mxu0 0.0
        %v647 = vand.u32 %v290, 4294901760
        %648 = vmatpush1.msra.mxu0 %v647
        %649 = vmatprep.subr.mxu0 0.0
        %v650 = vand.u32 %v289, 4294901760
        %651 = vmatpush1.msra.mxu0 %v650
        %652 = vmatprep.subr.mxu0 0.0
        %v653 = vand.u32 %v288, 4294901760
        %654 = vmatpush1.msra.mxu0 %v653
        %655 = vmatprep.subr.mxu0 0.0
        %v656 = vand.u32 %v287, 4294901760
        %657 = vmatpush1.msra.mxu0 %v656
        %658 = vmatprep.subr.mxu0 0.0
        %v659 = vand.u32 %v286, 4294901760
        %660 = vmatpush1.msra.mxu0 %v659
        %661 = vmatprep.subr.mxu0 0.0
        %662 = vmatpush2.msra.mxu0 0.0
        %663 = vmatprep.subr.mxu0 0.0
        %664 = vmatpush2.msra.mxu0 0.0
        %665 = vmatprep.subr.mxu0 0.0
        %666 = vmatpush2.msra.mxu0 0.0
        %667 = vmatprep.subr.mxu0 0.0
        %668 = vmatpush2.msra.mxu0 0.0
        %669 = vmatprep.subr.mxu0 0.0
        %670 = vmatpush2.msra.mxu0 0.0
        %671 = vmatprep.subr.mxu0 0.0
        %672 = vmatpush2.msra.mxu0 0.0
        %673 = vmatprep.subr.mxu0 0.0
        %674 = vmatpush2.msra.mxu0 0.0
        %675 = vmatprep.subr.mxu0 0.0
        %676 = vmatpush2.msra.mxu0 0.0
        %677 = vmatprep.subr.mxu0 0.0
        %678 = vmatpush2.msra.mxu0 0.0
        %679 = vmatprep.subr.mxu0 0.0
        %680 = vmatpush2.msra.mxu0 0.0
        %681 = vmatprep.subr.mxu0 0.0
        %682 = vmatpush2.msra.mxu0 0.0
        %683 = vmatprep.subr.mxu0 0.0
        %684 = vmatpush2.msra.mxu0 0.0
        %685 = vmatprep.subr.mxu0 0.0
        %686 = vmatpush2.msra.mxu0 0.0
        %687 = vmatprep.subr.mxu0 0.0
        %688 = vmatpush2.msra.mxu0 0.0
        %689 = vmatprep.subr.mxu0 0.0
        %690 = vmatpush2.msra.mxu0 0.0
        %691 = vmatprep.subr.mxu0 0.0
        %692 = vmatpush2.msra.mxu0 0.0
        %693 = vmatprep.mubr.f32.mxu0 0.0
        %v694 = vand.u32 %v301, 4294901760
        %v695 = vsub.f32 %v301, %v694
        %v696 = vand.u32 %v695, 4294901760
        %697 = vmatmul.mubr.f32.gmra.mxu0 %v696
        %v698 = vpop.f32.mrf.mxu0
        %v699 = vadd.f32 %v614, %v698
        %v700 = vpop.f32.mrf.mxu0
        %701 = vdwg.mxu0
        %702 = vmatprep.subr.mxu0 0.0
        %703 = vmatpush1.msra.mxu0 0.0
        %704 = vmatprep.subr.mxu0 0.0
        %705 = vmatpush1.msra.mxu0 0.0
        %706 = vmatprep.subr.mxu0 0.0
        %707 = vmatpush1.msra.mxu0 0.0
        %708 = vmatprep.subr.mxu0 0.0
        %709 = vmatpush1.msra.mxu0 0.0
        %710 = vmatprep.subr.mxu0 0.0
        %v711 = vand.u32 %v297, 4294901760
        %v712 = vsub.f32 %v297, %v711
        %v713 = vand.u32 %v712, 4294901760
        %714 = vmatpush1.msra.mxu0 %v713
        %715 = vmatprep.subr.mxu0 0.0
        %v716 = vand.u32 %v296, 4294901760
        %v717 = vsub.f32 %v296, %v716
        %v718 = vand.u32 %v717, 4294901760
        %719 = vmatpush1.msra.mxu0 %v718
        %720 = vmatprep.subr.mxu0 0.0
        %v721 = vand.u32 %v295, 4294901760
        %v722 = vsub.f32 %v295, %v721
        %v723 = vand.u32 %v722, 4294901760
        %724 = vmatpush1.msra.mxu0 %v723
        %725 = vmatprep.subr.mxu0 0.0
        %v726 = vand.u32 %v294, 4294901760
        %v727 = vsub.f32 %v294, %v726
        %v728 = vand.u32 %v727, 4294901760
        %729 = vmatpush1.msra.mxu0 %v728
        %730 = vmatprep.subr.mxu0 0.0
        %v731 = vand.u32 %v293, 4294901760
        %v732 = vsub.f32 %v293, %v731
        %v733 = vand.u32 %v732, 4294901760
        %734 = vmatpush1.msra.mxu0 %v733
        %735 = vmatprep.subr.mxu0 0.0
        %v736 = vand.u32 %v292, 4294901760
        %v737 = vsub.f32 %v292, %v736
        %v738 = vand.u32 %v737, 4294901760
        %739 = vmatpush1.msra.mxu0 %v738
        %740 = vmatprep.subr.mxu0 0.0
        %v741 = vand.u32 %v291, 4294901760
        %v742 = vsub.f32 %v291, %v741
        %v743 = vand.u32 %v742, 4294901760
        %744 = vmatpush1.msra.mxu0 %v743
        %745 = vmatprep.subr.mxu0 0.0
        %v746 = vand.u32 %v290, 4294901760
        %v747 = vsub.f32 %v290, %v746
        %v748 = vand.u32 %v747, 4294901760
        %749 = vmatpush1.msra.mxu0 %v748
        %750 = vmatprep.subr.mxu0 0.0
        %v751 = vand.u32 %v289, 4294901760
        %v752 = vsub.f32 %v289, %v751
        %v753 = vand.u32 %v752, 4294901760
        %754 = vmatpush1.msra.mxu0 %v753
        %755 = vmatprep.subr.mxu0 0.0
        %v756 = vand.u32 %v288, 4294901760
        %v757 = vsub.f32 %v288, %v756
        %v758 = vand.u32 %v757, 4294901760
        %759 = vmatpush1.msra.mxu0 %v758
        %760 = vmatprep.subr.mxu0 0.0
        %v761 = vand.u32 %v287, 4294901760
        %v762 = vsub.f32 %v287, %v761
        %v763 = vand.u32 %v762, 4294901760
        %764 = vmatpush1.msra.mxu0 %v763
        %765 = vmatprep.subr.mxu0 0.0
        %v766 = vand.u32 %v286, 4294901760
        %v767 = vsub.f32 %v286, %v766
        %v768 = vand.u32 %v767, 4294901760
        %769 = vmatpush1.msra.mxu0 %v768
        %770 = vmatprep.subr.mxu0 0.0
        %771 = vmatpush2.msra.mxu0 0.0
        %772 = vmatprep.subr.mxu0 0.0
        %773 = vmatpush2.msra.mxu0 0.0
        %774 = vmatprep.subr.mxu0 0.0
        %775 = vmatpush2.msra.mxu0 0.0
        %776 = vmatprep.subr.mxu0 0.0
        %777 = vmatpush2.msra.mxu0 0.0
        %778 = vmatprep.subr.mxu0 0.0
        %779 = vmatpush2.msra.mxu0 0.0
        %780 = vmatprep.subr.mxu0 0.0
        %781 = vmatpush2.msra.mxu0 0.0
        %782 = vmatprep.subr.mxu0 0.0
        %783 = vmatpush2.msra.mxu0 0.0
        %784 = vmatprep.subr.mxu0 0.0
        %785 = vmatpush2.msra.mxu0 0.0
        %786 = vmatprep.subr.mxu0 0.0
        %787 = vmatpush2.msra.mxu0 0.0
        %788 = vmatprep.subr.mxu0 0.0
        %789 = vmatpush2.msra.mxu0 0.0
        %790 = vmatprep.subr.mxu0 0.0
        %791 = vmatpush2.msra.mxu0 0.0
        %792 = vmatprep.subr.mxu0 0.0
        %793 = vmatpush2.msra.mxu0 0.0
        %794 = vmatprep.subr.mxu0 0.0
        %795 = vmatpush2.msra.mxu0 0.0
        %796 = vmatprep.subr.mxu0 0.0
        %797 = vmatpush2.msra.mxu0 0.0
        %798 = vmatprep.subr.mxu0 0.0
        %799 = vmatpush2.msra.mxu0 0.0
        %800 = vmatprep.subr.mxu0 0.0
        %801 = vmatpush2.msra.mxu0 0.0
        %802 = vmatprep.mubr.f32.mxu0 0.0
        %v803 = vand.u32 %v301, 4294901760
        %804 = vmatmul.mubr.f32.gmra.mxu0 %v803
        %v805 = vpop.f32.mrf.mxu0
        %v806 = vadd.f32 %v699, %v805
        %v807 = vpop.f32.mrf.mxu0
        %808 = vdwg.mxu0
        %809 = vmatprep.subr.mxu0 0.0
        %810 = vmatpush1.msra.mxu0 0.0
        %811 = vmatprep.subr.mxu0 0.0
        %812 = vmatpush1.msra.mxu0 0.0
        %813 = vmatprep.subr.mxu0 0.0
        %814 = vmatpush1.msra.mxu0 0.0
        %815 = vmatprep.subr.mxu0 0.0
        %816 = vmatpush1.msra.mxu0 0.0
        %817 = vmatprep.subr.mxu0 0.0
        %v818 = vand.u32 %v297, 4294901760
        %819 = vmatpush1.msra.mxu0 %v818
        %820 = vmatprep.subr.mxu0 0.0
        %v821 = vand.u32 %v296, 4294901760
        %822 = vmatpush1.msra.mxu0 %v821
        %823 = vmatprep.subr.mxu0 0.0
        %v824 = vand.u32 %v295, 4294901760
        %825 = vmatpush1.msra.mxu0 %v824
        %826 = vmatprep.subr.mxu0 0.0
        %v827 = vand.u32 %v294, 4294901760
        %828 = vmatpush1.msra.mxu0 %v827
        %829 = vmatprep.subr.mxu0 0.0
        %v830 = vand.u32 %v293, 4294901760
        %831 = vmatpush1.msra.mxu0 %v830
        %832 = vmatprep.subr.mxu0 0.0
        %v833 = vand.u32 %v292, 4294901760
        %834 = vmatpush1.msra.mxu0 %v833
        %835 = vmatprep.subr.mxu0 0.0
        %v836 = vand.u32 %v291, 4294901760
        %837 = vmatpush1.msra.mxu0 %v836
        %838 = vmatprep.subr.mxu0 0.0
        %v839 = vand.u32 %v290, 4294901760
        %840 = vmatpush1.msra.mxu0 %v839
        %841 = vmatprep.subr.mxu0 0.0
        %v842 = vand.u32 %v289, 4294901760
        %843 = vmatpush1.msra.mxu0 %v842
        %844 = vmatprep.subr.mxu0 0.0
        %v845 = vand.u32 %v288, 4294901760
        %846 = vmatpush1.msra.mxu0 %v845
        %847 = vmatprep.subr.mxu0 0.0
        %v848 = vand.u32 %v287, 4294901760
        %849 = vmatpush1.msra.mxu0 %v848
        %850 = vmatprep.subr.mxu0 0.0
        %v851 = vand.u32 %v286, 4294901760
        %852 = vmatpush1.msra.mxu0 %v851
        %853 = vmatprep.subr.mxu0 0.0
        %854 = vmatpush2.msra.mxu0 0.0
        %855 = vmatprep.subr.mxu0 0.0
        %856 = vmatpush2.msra.mxu0 0.0
        %857 = vmatprep.subr.mxu0 0.0
        %858 = vmatpush2.msra.mxu0 0.0
        %859 = vmatprep.subr.mxu0 0.0
        %860 = vmatpush2.msra.mxu0 0.0
        %861 = vmatprep.subr.mxu0 0.0
        %862 = vmatpush2.msra.mxu0 0.0
        %863 = vmatprep.subr.mxu0 0.0
        %864 = vmatpush2.msra.mxu0 0.0
        %865 = vmatprep.subr.mxu0 0.0
        %866 = vmatpush2.msra.mxu0 0.0
        %867 = vmatprep.subr.mxu0 0.0
        %868 = vmatpush2.msra.mxu0 0.0
        %869 = vmatprep.subr.mxu0 0.0
        %870 = vmatpush2.msra.mxu0 0.0
        %871 = vmatprep.subr.mxu0 0.0
        %872 = vmatpush2.msra.mxu0 0.0
        %873 = vmatprep.subr.mxu0 0.0
        %874 = vmatpush2.msra.mxu0 0.0
        %875 = vmatprep.subr.mxu0 0.0
        %876 = vmatpush2.msra.mxu0 0.0
        %877 = vmatprep.subr.mxu0 0.0
        %878 = vmatpush2.msra.mxu0 0.0
        %879 = vmatprep.subr.mxu0 0.0
        %880 = vmatpush2.msra.mxu0 0.0
        %881 = vmatprep.subr.mxu0 0.0
        %882 = vmatpush2.msra.mxu0 0.0
        %883 = vmatprep.subr.mxu0 0.0
        %884 = vmatpush2.msra.mxu0 0.0
        %885 = vmatprep.mubr.f32.mxu0 0.0
        %v886 = vand.u32 %v301, 4294901760
        %887 = vmatmul.mubr.f32.gmra.mxu0 %v886
        %v888 = vpop.f32.mrf.mxu0
        %v889 = vadd.f32 %v806, %v888
        %v890 = vpop.f32.mrf.mxu0
        %891 = vdwg.mxu0
        %v892 = vld [vmem:[%s3] sm:$0x1]
        %v893 = vld [vmem:[%s4] sm:$0x1]
        %894 = vadd.xlane.f32.xlu0 %v889
        %v895 = vpop.xlane.xlu0 %894
        %v896 = vmul.f32 %v895, 0.0078125
        %v897 = vsub.f32 %v889, %v896
        %v898 = vmul.f32 %v897, %v897
        %899 = vadd.xlane.f32.xlu0 %v898
        %v900 = vpop.xlane.xlu0 %899
        %v901 = vmul.f32 %v900, 0.0078125
        %v902 = vadd.f32 %v901, 1e-12
        %v903 = vrsqrt.pop %v902
        %v904 = vmul.f32 %v897, %v903
        %v906 = vlaneseq
        %v907 = vshrl.u32 %v906, 7
        %v908 = vsub.s32 0, %v907
        %v909 = vrot.slane %v892, %v908
        %v911 = vmul.f32 %v904, %v909
        %v913 = vlaneseq
        %v914 = vshrl.u32 %v913, 7
        %v915 = vsub.s32 0, %v914
        %v916 = vrot.slane %v893, %v915
        %v918 = vadd.f32 %v911, %v916
        %919 = vst [vmem:[%s265] sm:$0xff] %v918
        %s920 = sand.u32 %s159, 1
        %s921 = scalar_lea.sflag [#allocation4], %s920
        %s922 = sand.u32 %s159, 1
        %s923 = smul.addr %s922, 8
        %s924 = scalar_lea.vmem [#allocation5], %s923
        // Predicated region
        $region45: #{tpu_custom_call.1} parent=39 // pred_check
          %p925 = pneg %p169
        $region46: #{tpu_custom_call.1} parent=39 // pred_check_branch
          %927 = sbr.rel (%p925) target = $region48
        $region47: #{tpu_custom_call.1} parent=39 // pred_region
          %s929 = ssub.s32 128, 128
          %930 = vsyncadd %s921, %s929
          %s931 = sadd.s32 %s24, %s25
          %s932 = smul.addr %s931, 128
          %s933 = scalar_lea.hbm %s5, %s932
          %s935 = sshll.u32 %s924, 4
          %s936 = int_to_ptr.vmem [resolvable:$true] %s935
          %938 = dma.vmem_to_hbm [thread:$0]  %s936, 128, %s933, %s921
        $region48: #{tpu_custom_call.1} parent=39 // pred_fallthru
          _
      $region40: #{tpu_custom_call.1} parent=5 // pred_fallthru
        _
      %p939 = scmp.le.s32.totalorder 2, %s15
      // Predicated region
      $region49: #{tpu_custom_call.1} parent=5 // pred_check
        %p940 = pneg %p939
      $region50: #{tpu_custom_call.1} parent=5 // pred_check_branch
        %942 = sbr.rel (%p940) target = $region52
      $region51: #{tpu_custom_call.1} parent=5 // pred_region
        %s943 = ssub.s32 %s15, 2
        // Predicated region
        $region53: #{tpu_custom_call.1} parent=51 // pred_check
          %p944 = pneg %p175
        $region54: #{tpu_custom_call.1} parent=51 // pred_check_branch
          %946 = sbr.rel (%p944) target = $region56
        $region55: #{tpu_custom_call.1} parent=51 // pred_region
          %s947 = sand.u32 %s160, 1
          %s948 = scalar_lea.sflag [#allocation4], %s947
          %s949 = sand.u32 %s160, 1
          %s950 = smul.addr %s949, 8
          %s951 = scalar_lea.vmem [#allocation5], %s950
          %952 = dma.done %s948, 128
        $region56: #{tpu_custom_call.1} parent=51 // pred_fallthru
          _
      $region52: #{tpu_custom_call.1} parent=5 // pred_fallthru
        _
    $region6: #{tpu_custom_call.1} parent=1 // loop_footer
      %s19 = sadd.s32 1, %s15
    $region7: #{tpu_custom_call.1} parent=1 // loop_footer_branch
      %14 = sbr.rel target = $region3
    $region8: #{tpu_custom_call.1} parent=1 // loop_exit
      _
    %953 = vsyncpa [#allocation3], 1
    %s954 = scalar_lea.sflag [#allocation3], 1
    %955 = vsyncpa %s954, 1
    %956 = vsyncpa [#allocation4], 1
    %s957 = scalar_lea.sflag [#allocation4], 1
    %958 = vsyncpa %s957, 1

</llo_original>
